<compile_context>
chip_gen: v7x
topology: tpu7x:2x2x1
jax: 0.10.0
libtpu: 0.0.40
codegen_flags: <defaults>
</compile_context>

<pallas_src>
import jax
import jax.numpy as jnp
from jax.experimental import pallas as pl
from jax.experimental.pallas import tpu as pltpu


def _reshape_kernel(x_ref, o_ref):
    # x_ref: (TB, TM, TN)  (size-1 channel dim squeezed away by the BlockSpec)
    # o_ref: (TB, TN, TM)
    # Minor-dims transpose -> XLU; free under the DMA-bound roofline.
    o_ref[...] = jnp.swapaxes(x_ref[...], 1, 2)


def _pick_spatial_tile(dim: int, cap: int) -> int:
    """Full dim if it fits under `cap`; otherwise a multiple of 128, preferring
    one that divides `dim` (no masked boundary tiles from pl.cdiv)."""
    if dim <= cap:
        return dim
    largest = max(128, (cap // 128) * 128)
    t = largest
    while t >= 128:
        if dim % t == 0:
            return t
        t -= 128
    return largest


def reshape_forward(x: jax.Array, *, target_tile_bytes: int = 4 << 20) -> jax.Array:
    """x: (B, 1, M, N) -> (B, N, M)   (torch: x.squeeze(1).permute(0, 2, 1))."""
    B, C, M, N = x.shape
    assert C == 1, "Reshape.forward squeezes dim 1; it must have size 1"

    itemsize = jnp.dtype(x.dtype).itemsize

    # Cap for each spatial tile dim so a fully-tiled (TM, TN) block is about
    # `target_tile_bytes` (1024 for f32 -> 4 MiB tile, the v7x sweet spot).
    cap = int((target_tile_bytes / itemsize) ** 0.5)
    cap = max(128, (cap // 128) * 128)

    TM = _pick_spatial_tile(M, cap)
    TN = _pick_spatial_tile(N, cap)

    # Batch-block so each grid step moves ~target_tile_bytes even when the
    # per-batch (M, N) slab is small (typical ECAPA: 80 x a-few-hundred).
    slab_bytes = TM * TN * itemsize
    TB = int(max(1, min(B, target_tile_bytes // max(slab_bytes, 1))))

    def grid_of(tb):
        return (pl.cdiv(B, tb), pl.cdiv(M, TM), pl.cdiv(N, TN))

    # Keep enough grid steps to feed both TensorCores (v7x) / fill the pipeline.
    while TB > 1 and grid_of(TB)[0] * grid_of(TB)[1] * grid_of(TB)[2] < 4:
        TB = max(1, TB // 2)

    grid = grid_of(TB)

    # Double-buffered footprint: 2 x (input tile + output tile), same size each.
    tile_bytes = TB * TM * TN * itemsize
    footprint = 4 * tile_bytes
    vmem_limit = min(max(2 * footprint, 16 << 20), 48 << 20)

    return pl.pallas_call(
        _reshape_kernel,
        out_shape=jax.ShapeDtypeStruct((B, N, M), x.dtype),
        grid=grid,
        in_specs=[
            # None == squeezed size-1 channel dim (like torch's squeeze(1)).
            pl.BlockSpec((TB, None, TM, TN), lambda b, i, j: (b, 0, i, j)),
        ],
        out_specs=pl.BlockSpec((TB, TN, TM), lambda b, i, j: (b, j, i)),
        compiler_params=pltpu.CompilerParams(
            dimension_semantics=("parallel", "parallel", "parallel"),
            vmem_limit_bytes=int(vmem_limit),
        ),
        cost_estimate=pl.CostEstimate(
            flops=0,
            transcendentals=0,
            bytes_accessed=2 * B * M * N * itemsize,
        ),
    )(x)


def reshape_ref(x: jax.Array) -> jax.Array:
    """Pure-JAX reference of the PyTorch forward."""
    return jnp.transpose(x[:, 0, :, :], (0, 2, 1))


if __name__ == "__main__":
    key = jax.random.PRNGKey(0)
    # Small ECAPA-like shapes: batch=4, channel=1 (squeezed), frames=48, mels=80.
    B, C, M, N = 4, 1, 48, 80
    x = jax.random.normal(key, (B, C, M, N), dtype=jnp.float32)

    y = reshape_forward(x)
    jax.block_until_ready(y)

    y_ref = reshape_ref(x)
    assert y.shape == (B, N, M), f"bad shape {y.shape}"
    assert jnp.array_equal(y, y_ref), "mismatch vs reference"

    print("KERNEL_OK")
</pallas_src>

<mosaic_0001>
module attributes {stable_mosaic.version = 11 : i64} {
  func.func @_reshape_kernel(%arg0: i32, %arg1: i32, %arg2: i32, %arg3: memref<1x1x48x80xf32, #tpu.memory_space<vmem>>, %arg4: memref<1x80x48xf32, #tpu.memory_space<vmem>>) attributes {dimension_semantics = [#tpu.dimension_semantics<parallel>, #tpu.dimension_semantics<parallel>, #tpu.dimension_semantics<parallel>], iteration_bounds = array<i64: 4, 1, 1>, scalar_prefetch = 0 : i64, scratch_operands = 0 : i64, tpu.core_type = #tpu.core_type<tc>, window_params = [{transform_indices = @transform_0, window_bounds = array<i64: 1, 1, 48, 80>}, {transform_indices = @transform_1, window_bounds = array<i64: 1, 80, 48>}]} {
    %c0 = arith.constant 0 : index
    %c0_0 = arith.constant 0 : index
    %c0_1 = arith.constant 0 : index
    %c0_2 = arith.constant 0 : index
    %0 = vector.load %arg3[%c0, %c0_0, %c0_1, %c0_2] : memref<1x1x48x80xf32, #tpu.memory_space<vmem>>, vector<1x1x48x80xf32>
    %1 = vector.shape_cast %0 : vector<1x1x48x80xf32> to vector<1x48x80xf32>
    %2 = tpu.transpose %1, [0, 2, 1] : vector<1x48x80xf32> -> vector<1x80x48xf32>
    %c0_3 = arith.constant 0 : index
    %c0_4 = arith.constant 0 : index
    %c0_5 = arith.constant 0 : index
    %3 = vector.load %arg4[%c0_3, %c0_4, %c0_5] : memref<1x80x48xf32, #tpu.memory_space<vmem>>, vector<1x80x48xf32>
    tpu.vector_store %arg4[%c0_3, %c0_4, %c0_5], %2 {strides = array<i32>} : memref<1x80x48xf32, #tpu.memory_space<vmem>>, vector<1x80x48xf32>,
    return
  }
  func.func @transform_0(%arg0: i32, %arg1: i32, %arg2: i32) -> (i32, i32, i32, i32) {
    %c0_i32 = arith.constant 0 : i32
    %c0_i32_0 = arith.constant 0 : i32
    return %arg0, %c0_i32, %arg1, %arg2 : i32, i32, i32, i32
  }
  func.func @transform_1(%arg0: i32, %arg1: i32, %arg2: i32) -> (i32, i32, i32) {
    %c0_i32 = arith.constant 0 : i32
    return %arg0, %arg2, %arg1 : i32, i32, i32
  }
}

</mosaic_0001>

<llo_original>
// kernel: tpu_custom_call.1
$region0: #{tpu_custom_call.1}
  #allocation0 [shape = 'u32[]', space=smem, size = 0x4, offset = 0x4, fixed_abs, tag = 'smem constant byte address 0x4 - core index']
  #allocation1 [shape = 'u32[144,128]{1,0:T(1,128)}', space=vmem, size = 0x12000, scoped, tag = 'internal scratch']
  %s0 = inlined_call_operand.hbm [shape: f32[4,1,48,80], index: 0, kind: input, shape index: {}]
  %s1 = inlined_call_operand.vmem [shape: f32[4,80,48], index: 1, kind: output, shape index: {}]
  %s2 = sld [smem:[#allocation0]]
  $region41: #{tpu_custom_call.1} parent=0
    _
  %s4 = ssub.s32 1, %s2
  %s5 = scalar_select 0, %s4, %s2
  $region1: #{tpu_custom_call.1} parent=0
    #allocation2 [shape = 'u8[49152]{0}', space=vmem, size = 0xc000, scoped, tag = 'input window, operand 0']
    #allocation3 [shape = 's32[2]{0}', space=sflag, size = 0x8, scoped, tag = 'scoped memory for tpu_custom_call.1']
    %6 = vsyncpa [#allocation3], 0
    %s7 = scalar_lea.sflag [#allocation3], 1
    %8 = vsyncpa %s7, 0
    loop: start=0, step=1, limit=6
    $region2: #{tpu_custom_call.1} parent=1 // loop_pre_header
      _
    $region3: #{tpu_custom_call.1} parent=1 // loop_header
      %s10 = sphi 0, %s14
      %p11 = scmp.ge.s32.totalorder %s10, 6
      %s17 = sphi 0, %s36
      %s18 = sphi 0, %s32
      %s19 = sphi 0, %s28
      %s20 = sphi 0, %s17
      %s21 = sphi 0, %s18
      %s22 = sphi 0, %s19
      %s23 = sphi 0, %s20
      %s24 = sphi 0, %s21
      %s25 = sphi 0, %s22
      %s43 = sphi 0, %s45
      %s46 = sphi 0, %s43
      %s47 = sphi 0, %s46
      %s63 = sphi 0, %s47
      %s73 = sphi 0, %s75
      %s76 = sphi 0, %s73
      %s77 = sphi 0, %s76
      %s93 = sphi 0, %s77
    $region4: #{tpu_custom_call.1} parent=1 // loop_header_branch
      %13 = sbr.rel (%p11) target = $region8
    $region5: #{tpu_custom_call.1} parent=1 // loop_body
      %s15 = ssub.s32 %s10, 1
      %s16 = ssub.s32 %s10, 2
      %s26 = sadd.s32 1, %s19
      %p27 = scmp.ge.s32.totalorder %s26, 1
      %s28 = scalar_select %p27, 0, %s26
      %s29 = sadd.s32 1, %s18
      %s30 = scalar_select %p27, %s29, %s18
      %p31 = scmp.ge.s32.totalorder %s30, 1
      %s32 = scalar_select %p31, 0, %s30
      %s33 = sadd.s32 1, %s17
      %s34 = scalar_select %p31, %s33, %s17
      %p35 = scmp.ge.s32.totalorder %s34, 4
      %s36 = scalar_select %p35, 0, %s34
      %s37 = ssub.s32 %s17, %s36
      %s38 = ssub.s32 %s18, %s32
      %s39 = sor.u32 %s37, %s38
      %s40 = ssub.s32 %s19, %s28
      %s41 = sor.u32 %s39, %s40
      %p42 = scmp.eq.s32.totalorder %s41, 0
      %s44 = sadd.s32 %s43, 1
      %s45 = scalar_select %p42, %s43, %s44
      %p48 = pneg %p42
      %p49 = scmp.eq.s32.totalorder %s10, 3
      %p50 = por %p48, %p49
      %p51 = scmp.ne.s32.totalorder %s43, %s46
      %p52 = scmp.eq.s32.totalorder %s10, 0
      %p53 = por %p51, %p52
      %p54 = scmp.ne.s32.totalorder %s43, %s46
      %p55 = scmp.eq.s32.totalorder %s15, 3
      %p56 = por %p54, %p55
      %p57 = scmp.ne.s32.totalorder %s46, %s47
      %p58 = scmp.eq.s32.totalorder %s15, 0
      %p59 = por %p57, %p58
      %p60 = scmp.ne.s32.totalorder %s46, %s47
      %p61 = scmp.eq.s32.totalorder %s16, 3
      %p62 = por %p60, %p61
      %p64 = scmp.ne.s32.totalorder %s47, %s63
      %p65 = scmp.eq.s32.totalorder %s16, 0
      %p66 = por %p64, %p65
      %s67 = ssub.s32 %s17, %s36
      %s68 = ssub.s32 %s19, %s28
      %s69 = sor.u32 %s67, %s68
      %s70 = ssub.s32 %s18, %s32
      %s71 = sor.u32 %s69, %s70
      %p72 = scmp.eq.s32.totalorder %s71, 0
      %s74 = sadd.s32 %s73, 1
      %s75 = scalar_select %p72, %s73, %s74
      %p78 = pneg %p72
      %p79 = scmp.eq.s32.totalorder %s10, 3
      %p80 = por %p78, %p79
      %p81 = scmp.ne.s32.totalorder %s73, %s76
      %p82 = scmp.eq.s32.totalorder %s10, 0
      %p83 = por %p81, %p82
      %p84 = scmp.ne.s32.totalorder %s73, %s76
      %p85 = scmp.eq.s32.totalorder %s15, 3
      %p86 = por %p84, %p85
      %p87 = scmp.ne.s32.totalorder %s76, %s77
      %p88 = scmp.eq.s32.totalorder %s15, 0
      %p89 = por %p87, %p88
      %p90 = scmp.ne.s32.totalorder %s76, %s77
      %p91 = scmp.eq.s32.totalorder %s16, 3
      %p92 = por %p90, %p91
      %p94 = scmp.ne.s32.totalorder %s77, %s93
      %p95 = scmp.eq.s32.totalorder %s16, 0
      %p96 = por %p94, %p95
      %p97 = scmp.le.s32.totalorder 1, %s10
      %p98 = scmp.lt.s32.totalorder %s10, 5
      %p99 = pnand %p97, %p98
      %p100 = pneg %p99
      // Predicated region
      $region9: #{tpu_custom_call.1} parent=5 // pred_check
        _
      $region10: #{tpu_custom_call.1} parent=5 // pred_check_branch
        %102 = sbr.rel (%p99) target = $region12
      $region11: #{tpu_custom_call.1} parent=5 // pred_region
        %s103 = ssub.s32 %s10, 1
      $region12: #{tpu_custom_call.1} parent=5 // pred_fallthru
        _
      %p104 = scmp.lt.s32.totalorder %s10, 4
      // Predicated region
      $region13: #{tpu_custom_call.1} parent=5 // pred_check
        %p105 = pneg %p104
      $region14: #{tpu_custom_call.1} parent=5 // pred_check_branch
        %107 = sbr.rel (%p105) target = $region16
      $region15: #{tpu_custom_call.1} parent=5 // pred_region
        // Predicated region
        $region17: #{tpu_custom_call.1} parent=15 // pred_check
          %p108 = pneg %p53
        $region18: #{tpu_custom_call.1} parent=15 // pred_check_branch
          %110 = sbr.rel (%p108) target = $region20
        $region19: #{tpu_custom_call.1} parent=15 // pred_region
          %s111 = sand.u32 %s43, 1
          %s112 = scalar_lea.sflag [#allocation3], %s111
          %s113 = sand.u32 %s43, 1
          %s114 = smul.addr %s113, 48
          %s115 = scalar_lea.vmem [#allocation2], %s114
          %s116 = smul.u32 6, %s18
          %s118 = ssub.s32 768, 768
          %119 = vsyncadd %s112, %s118
          %s120 = sadd.s32 %s19, %s116
          %s121 = smul.addr %s17, 6
          %s122 = sadd.s32 %s120, %s121
          %s123 = smul.addr %s122, 128
          %s124 = scalar_lea.hbm %s0, %s123
          %s125 = sshll.u32 %s115, 4
          %s126 = int_to_ptr.vmem [resolvable:$true] %s125
          %131 = dma.hbm_to_vmem [thread:$0]  %s124, 768, %s126, %s112, 128, 128, 8
        $region20: #{tpu_custom_call.1} parent=15 // pred_fallthru
          _
      $region16: #{tpu_custom_call.1} parent=5 // pred_fallthru
        _
      %p132 = scmp.le.s32.totalorder 1, %s10
      %p133 = scmp.lt.s32.totalorder %s10, 5
      %p134 = pnand %p132, %p133
      %p135 = pneg %p134
      // Predicated region
      $region21: #{tpu_custom_call.1} parent=5 // pred_check
        _
      $region22: #{tpu_custom_call.1} parent=5 // pred_check_branch
        %137 = sbr.rel (%p134) target = $region24
      $region23: #{tpu_custom_call.1} parent=5 // pred_region
        %s138 = ssub.s32 %s10, 1
        %s139 = sand.u32 %s46, 1
        %s140 = scalar_lea.sflag [#allocation3], %s139
        %s141 = sand.u32 %s46, 1
        %s142 = smul.addr %s141, 48
        %s143 = scalar_lea.vmem [#allocation2], %s142
        // Predicated region
        $region25: #{tpu_custom_call.1} parent=23 // pred_check
          %p144 = pneg %p59
        $region26: #{tpu_custom_call.1} parent=23 // pred_check_branch
          %146 = sbr.rel (%p144) target = $region28
        $region27: #{tpu_custom_call.1} parent=23 // pred_region
          %147 = dma.done %s140, 768
        $region28: #{tpu_custom_call.1} parent=23 // pred_fallthru
          _
        %s148 = sand.u32 %s46, 1
        %s149 = scalar_lea.sflag [#allocation3], %s148
        %s150 = sand.u32 %s46, 1
        %s151 = smul.addr %s150, 48
        %s152 = scalar_lea.vmem [#allocation2], %s151
        %p153 = pneg %p59
        %p154 = pneg %p56
        %p155 = pneg %p89
        %p156 = pneg %p86
        %s157 = smul.u32 10, %s22
        %p158 = scmp.lt.s32.totalorder %s20, 3
        %s159 = scalar_select %p158, %s20, 3
        %p160 = scmp.lt.s32.totalorder %s157, 9
        %s161 = scalar_select %p160, %s157, 9
        %p162 = scmp.lt.s32.totalorder %s21, 0
        %s163 = scalar_select %p162, %s21, 0
        %s164 = sadd.s32 %s163, %s161
        %s165 = smul.addr %s159, 10
        %s166 = sadd.s32 %s164, %s165
        %s167 = smul.addr %s166, 8
        %s168 = scalar_lea.vmem %s1, %s167
        %s169 = smul.u32 6, %s21
        %s170 = smul.u32 10, %s22
        %p171 = scmp.lt.s32.totalorder %s20, 3
        %s172 = scalar_select %p171, %s20, 3
        %p173 = scmp.lt.s32.totalorder %s170, 9
        %s174 = scalar_select %p173, %s170, 9
        %p175 = scmp.lt.s32.totalorder %s21, 0
        %s176 = scalar_select %p175, %s21, 0
        %s177 = sadd.s32 %s176, %s174
        %s178 = smul.addr %s172, 10
        %s179 = sadd.s32 %s177, %s178
        %s180 = smul.addr %s179, 8
        %s181 = scalar_lea.vmem %s1, %s180
        %s182 = smul.u32 10, %s22
        %v183 = vld [vmem:[%s143] sm:$0xff]
        %v184 = vld [vmem:[%s143 + $0x8] sm:$0xff]
        %v185 = vld [vmem:[%s143 + $0x10] sm:$0xff]
        %v186 = vld [vmem:[%s143 + $0x18] sm:$0xff]
        %v187 = vld [vmem:[%s143 + $0x20] sm:$0xff]
        %v188 = vld [vmem:[%s143 + $0x28] sm:$0xff]
        %189 = vxpose.xlu0.b32.start [1/16] %v183, 128
        %190 = vxpose.xlu0.b32.cont [2/16] %v184, 128
        %191 = vxpose.xlu0.b32.cont [3/16] %v185, 128
        %192 = vxpose.xlu0.b32.cont [4/16] %v186, 128
        %193 = vxpose.xlu0.b32.cont [5/16] %v187, 128
        %194 = vxpose.xlu0.b32.cont [6/16] %v188, 128
        %195 = vxpose.xlu0.b32.cont [7/16] 0.0, 128
        %196 = vxpose.xlu0.b32.cont [8/16] 0.0, 128
        %197 = vxpose.xlu0.b32.cont [9/16] 0.0, 128
        %198 = vxpose.xlu0.b32.cont [10/16] 0.0, 128
        %199 = vxpose.xlu0.b32.cont [11/16] 0.0, 128
        %200 = vxpose.xlu0.b32.cont [12/16] 0.0, 128
        %201 = vxpose.xlu0.b32.cont [13/16] 0.0, 128
        %202 = vxpose.xlu0.b32.cont [14/16] 0.0, 128
        %203 = vxpose.xlu0.b32.cont [15/16] 0.0, 128
        %204 = vxpose.xlu0.b32.end [16/16] 0.0, 128
        %v205 = vpop.trf.xlu0
        %v206 = vpop.trf.xlu0
        %v207 = vpop.trf.xlu0
        %v208 = vpop.trf.xlu0
        %v209 = vpop.trf.xlu0
        %v210 = vpop.trf.xlu0
        %v211 = vpop.trf.xlu0
        %v212 = vpop.trf.xlu0
        %v213 = vpop.trf.xlu0
        %v214 = vpop.trf.xlu0
        %v215 = vpop.trf.xlu0
        %v216 = vpop.trf.xlu0
        %v217 = vpop.trf.xlu0
        %v218 = vpop.trf.xlu0
        %v219 = vpop.trf.xlu0
        %v220 = vpop.trf.xlu0
        %vm221 = vcmask 392192
        %222 = vst.msk [vmem:[%s181] sm:$0xff] %vm221, %v205
        %223 = vst.msk [vmem:[%s181 + $0x8] sm:$0xff] %vm221, %v206
        %224 = vst.msk [vmem:[%s181 + $0x10] sm:$0xff] %vm221, %v207
        %225 = vst.msk [vmem:[%s181 + $0x18] sm:$0xff] %vm221, %v208
        %226 = vst.msk [vmem:[%s181 + $0x20] sm:$0xff] %vm221, %v209
        %227 = vst.msk [vmem:[%s181 + $0x28] sm:$0xff] %vm221, %v210
        %228 = vst.msk [vmem:[%s181 + $0x30] sm:$0xff] %vm221, %v211
        %229 = vst.msk [vmem:[%s181 + $0x38] sm:$0xff] %vm221, %v212
        %230 = vst.msk [vmem:[%s181 + $0x40] sm:$0xff] %vm221, %v213
        %231 = vst.msk [vmem:[%s181 + $0x48] sm:$0xff] %vm221, %v214
        %s232 = smul.u32 10, %s22
        %p233 = scmp.lt.s32.totalorder %s20, 3
        %s234 = scalar_select %p233, %s20, 3
        %p235 = scmp.lt.s32.totalorder %s232, 9
        %s236 = scalar_select %p235, %s232, 9
        %p237 = scmp.lt.s32.totalorder %s21, 0
        %s238 = scalar_select %p237, %s21, 0
        %s239 = sadd.s32 %s238, %s236
        %s240 = smul.addr %s234, 10
        %s241 = sadd.s32 %s239, %s240
        %s242 = smul.addr %s241, 8
        %s243 = scalar_lea.vmem %s1, %s242
        // Predicated region
        $region29: #{tpu_custom_call.1} parent=23 // pred_check
          %p244 = pneg %p86
        $region30: #{tpu_custom_call.1} parent=23 // pred_check_branch
          %246 = sbr.rel (%p244) target = $region32
        $region31: #{tpu_custom_call.1} parent=23 // pred_region
          %s247 = smul.u32 10, %s22
        $region32: #{tpu_custom_call.1} parent=23 // pred_fallthru
          _
      $region24: #{tpu_custom_call.1} parent=5 // pred_fallthru
        _
      %p248 = scmp.le.s32.totalorder 2, %s10
      // Predicated region
      $region33: #{tpu_custom_call.1} parent=5 // pred_check
        %p249 = pneg %p248
      $region34: #{tpu_custom_call.1} parent=5 // pred_check_branch
        %251 = sbr.rel (%p249) target = $region36
      $region35: #{tpu_custom_call.1} parent=5 // pred_region
        %s252 = ssub.s32 %s10, 2
        // Predicated region
        $region37: #{tpu_custom_call.1} parent=35 // pred_check
          %p253 = pneg %p92
        $region38: #{tpu_custom_call.1} parent=35 // pred_check_branch
          %255 = sbr.rel (%p253) target = $region40
        $region39: #{tpu_custom_call.1} parent=35 // pred_region
          %s256 = smul.u32 10, %s25
          %p257 = scmp.lt.s32.totalorder %s23, 3
          %s258 = scalar_select %p257, %s23, 3
          %p259 = scmp.lt.s32.totalorder %s256, 9
          %s260 = scalar_select %p259, %s256, 9
          %p261 = scmp.lt.s32.totalorder %s24, 0
          %s262 = scalar_select %p261, %s24, 0
          %s263 = sadd.s32 %s262, %s260
          %s264 = smul.addr %s258, 10
          %s265 = sadd.s32 %s263, %s264
          %s266 = smul.addr %s265, 8
          %s267 = scalar_lea.vmem %s1, %s266
        $region40: #{tpu_custom_call.1} parent=35 // pred_fallthru
          _
      $region36: #{tpu_custom_call.1} parent=5 // pred_fallthru
        _
    $region6: #{tpu_custom_call.1} parent=1 // loop_footer
      %s14 = sadd.s32 1, %s10
    $region7: #{tpu_custom_call.1} parent=1 // loop_footer_branch
      %9 = sbr.rel target = $region3
    $region8: #{tpu_custom_call.1} parent=1 // loop_exit
      _
    %268 = vsyncpa [#allocation3], 1
    %s269 = scalar_lea.sflag [#allocation3], 1
    %270 = vsyncpa %s269, 1

</llo_original>
